<compile_context>
chip_gen: v5e
topology: v5e:2x2
jax: 0.10.0
libtpu: 0.0.40
codegen_flags: <defaults>
</compile_context>

<pallas_src>
import functools

import jax
import jax.numpy as jnp
from jax import lax
from jax.experimental import pallas as pl
from jax.experimental.pallas import tpu as pltpu

_MIB = 1024 * 1024


# ----------------------------------------------------------------------------
# Helpers
# ----------------------------------------------------------------------------
def _round_up(x, m):
    return ((x + m - 1) // m) * m


def _tpu_vmem_bytes():
    """Physical VMEM capacity of the current TPU generation (best effort)."""
    try:
        info = pltpu.get_tpu_info()
        for attr in ("vmem_capacity_bytes", "vmem_bytes", "vmem_size_bytes"):
            v = getattr(info, attr, None)
            if v:
                return int(v)
    except Exception:
        pass
    return 64 * _MIB  # conservative default (v7x-sized)


def _budgets():
    """Generation-aware streaming budget / VMEM limit / fused-slab gate."""
    if _tpu_vmem_bytes() >= 96 * _MIB:      # v5e / v6e: 128 MiB VMEM
        return {"stream": 32 * _MIB, "limit": 100 * _MIB, "fused": 20 * _MIB}
    return {"stream": 12 * _MIB, "limit": 48 * _MIB, "fused": 10 * _MIB}  # v7x


def _pick_c_block(C, itemsize, budget, n_bufs, min_hw=512):
    """Largest channel block (C itself, or a multiple-of-8 divisor of C) that
    still allows an HW tile of >= min_hw lanes under the VMEM budget."""
    cap = budget // (n_bufs * min_hw * itemsize)
    if C <= cap:
        return C
    d = (min(cap, C) // 8) * 8
    while d >= 8:
        if C % d == 0:
            return d
        d -= 8
    return C  # no suitable divisor; fall back to full C


def _pick_hw_tile(HW, c_blk, itemsize, budget, n_bufs, max_tile_hw=None,
                  max_lanes=32768):
    """Lane-aligned HW tile under the VMEM budget; returns (tile, padded_HW)."""
    hw128 = _round_up(HW, 128)
    cap = budget // (n_bufs * c_blk * itemsize)
    cap = max(128, (cap // 128) * 128)
    cap = min(cap, max_lanes, hw128)
    if max_tile_hw is not None:
        cap = min(cap, max(128, (max_tile_hw // 128) * 128))
    n_steps = -(-hw128 // cap)                       # ceil
    t = min(cap, _round_up(-(-hw128 // n_steps), 128))
    hw_pad = _round_up(HW, t)
    return t, hw_pad


# ----------------------------------------------------------------------------
# In-kernel lane-wide pooling (VPU accumulate per 128-lane chunk, no per-chunk
# XLU cross-lane reduction).
# ----------------------------------------------------------------------------
def _accumulate_lanewise(x_ref, sum_sc, max_sc, base_off, hw_valid, padded):
    # x_ref block: (1, C_blk, T_HW). sum_sc/max_sc: (C_blk, 128) f32 scratch.
    t_hw = x_ref.shape[-1]
    n_chunks = t_hw // 128

    def body(k, carry):
        off = pl.multiple_of(k * 128, 128)
        chunk = x_ref[0, :, pl.ds(off, 128)].astype(jnp.float32)   # (C_blk, 128)
        if padded:
            lane = lax.broadcasted_iota(jnp.int32, chunk.shape, 1)
            valid = (base_off + off + lane) < hw_valid
            sum_sc[...] = sum_sc[...] + jnp.where(valid, chunk, 0.0)
            max_sc[...] = jnp.maximum(max_sc[...],
                                      jnp.where(valid, chunk, -jnp.inf))
        else:
            sum_sc[...] = sum_sc[...] + chunk
            max_sc[...] = jnp.maximum(max_sc[...], chunk)
        return carry

    lax.fori_loop(0, n_chunks, body, 0, unroll=min(8, n_chunks))


# ----------------------------------------------------------------------------
# Pass 1 kernel: spatial running sum + max per (b, c-block)
# ----------------------------------------------------------------------------
def _pool_kernel(x_ref, sum_ref, max_ref, sum_sc, max_sc, *, hw_valid, padded):
    j = pl.program_id(2)

    @pl.when(j == 0)
    def _init():
        sum_sc[...] = jnp.zeros_like(sum_sc)
        max_sc[...] = jnp.full_like(max_sc, -jnp.inf)

    _accumulate_lanewise(x_ref, sum_sc, max_sc, j * x_ref.shape[-1],
                         hw_valid, padded)

    @pl.when(j == pl.num_programs(2) - 1)
    def _finalize():
        # Single cross-lane (XLU) collapse per (b, c-block).
        sum_ref[...] = jnp.sum(sum_sc[...], axis=-1, keepdims=True)[None]
        max_ref[...] = jnp.max(max_sc[...], axis=-1, keepdims=True)[None]


# ----------------------------------------------------------------------------
# Pass 2 kernel: bandwidth-bound elementwise scale
# ----------------------------------------------------------------------------
def _scale_kernel(x_ref, s_ref, o_ref):
    # x_ref/o_ref: (1, C_blk, T_HW); s_ref: (1, C_blk, 1) f32
    o_ref[...] = x_ref[...] * s_ref[...].astype(o_ref.dtype)


# ----------------------------------------------------------------------------
# Fused single-pass kernel: pool -> MLP -> sigmoid -> scale (x read once)
# ----------------------------------------------------------------------------
def _fused_kernel(x_ref, w1_ref, b1_ref, w2_ref, b2_ref, o_ref, sum_sc, max_sc,
                  *, hw_valid, inv_hw, padded):
    sum_sc[...] = jnp.zeros_like(sum_sc)
    max_sc[...] = jnp.full_like(max_sc, -jnp.inf)
    _accumulate_lanewise(x_ref, sum_sc, max_sc, 0, hw_valid, padded)

    avg = jnp.sum(sum_sc[...], axis=-1, keepdims=True) * inv_hw      # (C, 1)
    mx = jnp.max(max_sc[...], axis=-1, keepdims=True)                # (C, 1)

    # Shared MLP applied to each pooled branch (hidden dim is zero-padded to a
    # multiple of 8 in the wrapper; padded rows/cols are exact no-ops).
    h_a = jnp.maximum(
        jnp.dot(w1_ref[...], avg, preferred_element_type=jnp.float32)
        + b1_ref[...], 0.0)
    h_m = jnp.maximum(
        jnp.dot(w1_ref[...], mx, preferred_element_type=jnp.float32)
        + b1_ref[...], 0.0)
    o_a = jnp.dot(w2_ref[...], h_a, preferred_element_type=jnp.float32) + b2_ref[...]
    o_m = jnp.dot(w2_ref[...], h_m, preferred_element_type=jnp.float32) + b2_ref[...]
    scale = jax.nn.sigmoid(o_a + o_m)                                # (C, 1)

    o_ref[...] = x_ref[...] * scale[None].astype(o_ref.dtype)


# ----------------------------------------------------------------------------
# Wrapper
# ----------------------------------------------------------------------------
def channel_attention(x, w1, b1, w2, b2, *, force_two_pass=False,
                      max_tile_hw=None):
    """CBAM channel attention forward pass.

    x:  (B, C, H, W) NCHW.
    w1: (hidden, C, 1, 1)  b1: (hidden,)   -- PyTorch Conv2d(1x1) fc1 params
    w2: (C, hidden, 1, 1)  b2: (C,)        -- PyTorch Conv2d(1x1) fc2 params
    """
    B, C, H, W = x.shape
    hidden = w1.shape[0]
    HW = H * W
    itemsize = x.dtype.itemsize
    budgets = _budgets()
    vmem_limit = budgets["limit"]

    w1m = w1.reshape(hidden, C).astype(jnp.float32)
    w2m = w2.reshape(C, hidden).astype(jnp.float32)
    b1v = b1.reshape(hidden).astype(jnp.float32)
    b2v = b2.reshape(C).astype(jnp.float32)

    x3 = x.reshape(B, C, HW)
    hw128 = _round_up(HW, 128)
    slab_bytes = C * hw128 * itemsize

    # -------- Fused single-pass path: x is read from HBM exactly once -------
    if (not force_two_pass) and slab_bytes <= budgets["fused"]:
        hw_pad = hw128
        padded = hw_pad != HW
        x3p = jnp.pad(x3, ((0, 0), (0, 0), (0, hw_pad - HW))) if padded else x3

        hidden_p = _round_up(hidden, 8)
        w1p = jnp.zeros((hidden_p, C), jnp.float32).at[:hidden].set(w1m)
        b1p = jnp.zeros((hidden_p, 1), jnp.float32).at[:hidden, 0].set(b1v)
        w2p = jnp.zeros((C, hidden_p), jnp.float32).at[:, :hidden].set(w2m)
        b2p = b2v.reshape(C, 1)

        out_p = pl.pallas_call(
            functools.partial(_fused_kernel, hw_valid=HW, inv_hw=1.0 / HW,
                              padded=padded),
            out_shape=jax.ShapeDtypeStruct((B, C, hw_pad), x.dtype),
            grid=(B,),
            in_specs=[
                pl.BlockSpec((1, C, hw_pad), lambda b: (b, 0, 0)),
                # Tiny weights: whole-array blocks, constant index maps.
                pl.BlockSpec((hidden_p, C), lambda b: (0, 0)),
                pl.BlockSpec((hidden_p, 1), lambda b: (0, 0)),
                pl.BlockSpec((C, hidden_p), lambda b: (0, 0)),
                pl.BlockSpec((C, 1), lambda b: (0, 0)),
            ],
            out_specs=pl.BlockSpec((1, C, hw_pad), lambda b: (b, 0, 0)),
            scratch_shapes=[pltpu.VMEM((C, 128), jnp.float32),
                            pltpu.VMEM((C, 128), jnp.float32)],
            compiler_params=pltpu.CompilerParams(
                dimension_semantics=("parallel",),
                vmem_limit_bytes=vmem_limit),
        )(x3p, w1p, b1p, w2p, b2p)
        out3 = out_p[:, :, :HW] if padded else out_p
        return out3.reshape(B, C, H, W)

    # -------- Streaming two-pass path ---------------------------------------
    c_blk = _pick_c_block(C, itemsize, budgets["stream"], n_bufs=4,
                          min_hw=min(512, hw128))
    n_c = C // c_blk
    t_hw2, hw_pad = _pick_hw_tile(HW, c_blk, itemsize, budgets["stream"],
                                  n_bufs=4, max_tile_hw=max_tile_hw)
    # Pass 1 streams only x (outputs are tiny), so it can afford a larger tile.
    cap1 = (budgets["stream"] // (2 * c_blk * itemsize) // 128) * 128
    t_hw1 = t_hw2
    for m in (8, 4, 2):
        cand = m * t_hw2
        if (cand <= cap1 and cand <= 32768 and hw_pad % cand == 0
                and (max_tile_hw is None or cand <= max_tile_hw)):
            t_hw1 = cand
            break

    padded = hw_pad != HW
    x3p = jnp.pad(x3, ((0, 0), (0, 0), (0, hw_pad - HW))) if padded else x3
    n_hw1 = hw_pad // t_hw1
    n_hw2 = hw_pad // t_hw2

    # ---- Pass 1: per-(b, c) spatial sum and max ----
    sum_pool, max_pool = pl.pallas_call(
        functools.partial(_pool_kernel, hw_valid=HW, padded=padded),
        out_shape=(jax.ShapeDtypeStruct((B, C, 1), jnp.float32),
                   jax.ShapeDtypeStruct((B, C, 1), jnp.float32)),
        grid=(B, n_c, n_hw1),
        in_specs=[pl.BlockSpec((1, c_blk, t_hw1), lambda b, c, j: (b, c, j))],
        out_specs=(pl.BlockSpec((1, c_blk, 1), lambda b, c, j: (b, c, 0)),
                   pl.BlockSpec((1, c_blk, 1), lambda b, c, j: (b, c, 0))),
        scratch_shapes=[pltpu.VMEM((c_blk, 128), jnp.float32),   # running sum
                        pltpu.VMEM((c_blk, 128), jnp.float32)],  # running max
        compiler_params=pltpu.CompilerParams(
            dimension_semantics=("parallel", "parallel", "arbitrary"),
            vmem_limit_bytes=vmem_limit),
    )(x3p)

    # ---- Tiny shared MLP (fc1 -> ReLU -> fc2) + sigmoid in plain JAX ----
    avg = sum_pool[:, :, 0] * (1.0 / HW)          # (B, C) f32
    mx = max_pool[:, :, 0]                        # (B, C) f32

    def mlp(p):
        h = jnp.maximum(p @ w1m.T + b1v, 0.0)
        return h @ w2m.T + b2v

    scale = jax.nn.sigmoid(mlp(avg) + mlp(mx))    # (B, C) f32
    scale3 = scale[:, :, None]                    # (B, C, 1)

    # ---- Pass 2: x * scale (pure x-in / x-out, lane-dense blocks) ----
    out_p = pl.pallas_call(
        _scale_kernel,
        out_shape=jax.ShapeDtypeStruct((B, C, hw_pad), x.dtype),
        grid=(B, n_c, n_hw2),
        in_specs=[pl.BlockSpec((1, c_blk, t_hw2), lambda b, c, j: (b, c, j)),
                  pl.BlockSpec((1, c_blk, 1), lambda b, c, j: (b, c, 0))],
        out_specs=pl.BlockSpec((1, c_blk, t_hw2), lambda b, c, j: (b, c, j)),
        compiler_params=pltpu.CompilerParams(
            dimension_semantics=("parallel", "parallel", "parallel"),
            vmem_limit_bytes=vmem_limit),
    )(x3p, scale3)

    out3 = out_p[:, :, :HW] if padded else out_p
    return out3.reshape(B, C, H, W)


# ----------------------------------------------------------------------------
# Pure-JAX reference mirroring the PyTorch forward
# ----------------------------------------------------------------------------
def channel_attention_ref(x, w1, b1, w2, b2):
    B, C, H, W = x.shape
    hidden = w1.shape[0]
    w1m = w1.reshape(hidden, C)
    w2m = w2.reshape(C, hidden)
    avg_pool = jnp.mean(x, axis=(2, 3))   # (B, C)
    max_pool = jnp.max(x, axis=(2, 3))    # (B, C)

    def mlp(p):
        h = jnp.maximum(p @ w1m.T + b1, 0.0)
        return h @ w2m.T + b2

    scale = jax.nn.sigmoid(mlp(avg_pool) + mlp(max_pool))   # (B, C)
    return scale[:, :, None, None] * x


if __name__ == "__main__":
    def _run_case(B, C, H, W, reduction=16, **kwargs):
        hidden = max(1, C // reduction)
        key = jax.random.PRNGKey(0)
        kx, kw1, kb1, kw2, kb2 = jax.random.split(key, 5)
        x = jax.random.normal(kx, (B, C, H, W), dtype=jnp.float32)
        w1 = jax.random.normal(kw1, (hidden, C, 1, 1), dtype=jnp.float32) * 0.1
        b1 = jax.random.normal(kb1, (hidden,), dtype=jnp.float32) * 0.1
        w2 = jax.random.normal(kw2, (C, hidden, 1, 1), dtype=jnp.float32) * 0.1
        b2 = jax.random.normal(kb2, (C,), dtype=jnp.float32) * 0.1

        out = jax.block_until_ready(channel_attention(x, w1, b1, w2, b2, **kwargs))
        ref = channel_attention_ref(x, w1, b1, w2, b2)
        assert out.shape == x.shape
        assert jnp.allclose(out, ref, atol=1e-5, rtol=1e-5), (
            f"mismatch vs reference for case {(B, C, H, W, kwargs)}")

    # 1) Fused single-pass path (per-batch slab fits VMEM).
    _run_case(2, 64, 16, 16)
    # 2) Streaming two-pass path, multiple HW grid steps (forced).
    _run_case(2, 64, 16, 16, force_two_pass=True, max_tile_hw=128)
    # 3) Ragged HW (100 lanes -> padded + masked), fused path.
    _run_case(2, 32, 10, 10)
    # 4) Ragged HW, streaming two-pass path.
    _run_case(2, 32, 10, 10, force_two_pass=True)

    print("KERNEL_OK")
</pallas_src>

<mosaic_0001>
module attributes {stable_mosaic.version = 11 : i64} {
  func.func @_fused_kernel(%arg0: i32, %arg1: memref<1x64x256xf32, #tpu.memory_space<vmem>>, %arg2: memref<8x64xf32, #tpu.memory_space<vmem>>, %arg3: memref<8x1xf32, #tpu.memory_space<vmem>>, %arg4: memref<64x8xf32, #tpu.memory_space<vmem>>, %arg5: memref<64x1xf32, #tpu.memory_space<vmem>>, %arg6: memref<1x64x256xf32, #tpu.memory_space<vmem>>, %arg7: memref<64x128xf32, #tpu.memory_space<vmem>>, %arg8: memref<64x128xf32, #tpu.memory_space<vmem>>) attributes {dimension_semantics = [#tpu.dimension_semantics<parallel>], iteration_bounds = array<i64: 2>, scalar_prefetch = 0 : i64, scratch_operands = 2 : i64, tpu.core_type = #tpu.core_type<tc>, window_params = [{transform_indices = @transform_0, window_bounds = array<i64: 1, 64, 256>}, {pipeline_mode = #tpu.pipeline_mode<synchronous>, transform_indices = @transform_1, window_bounds = array<i64: 8, 64>}, {pipeline_mode = #tpu.pipeline_mode<synchronous>, transform_indices = @transform_2, window_bounds = array<i64: 8, 1>}, {pipeline_mode = #tpu.pipeline_mode<synchronous>, transform_indices = @transform_3, window_bounds = array<i64: 64, 8>}, {pipeline_mode = #tpu.pipeline_mode<synchronous>, transform_indices = @transform_4, window_bounds = array<i64: 64, 1>}, {transform_indices = @transform_5, window_bounds = array<i64: 1, 64, 256>}]} {
    %cst = arith.constant 0.000000e+00 : f32
    %0 = vector.broadcast %cst : f32 to vector<64x128xf32>
    %c0 = arith.constant 0 : index
    %c0_0 = arith.constant 0 : index
    %1 = vector.load %arg7[%c0, %c0_0] : memref<64x128xf32, #tpu.memory_space<vmem>>, vector<64x128xf32>
    tpu.vector_store %arg7[%c0, %c0_0], %0 {strides = array<i32>} : memref<64x128xf32, #tpu.memory_space<vmem>>, vector<64x128xf32>,
    %cst_1 = arith.constant 0xFF800000 : f32
    %2 = vector.broadcast %cst_1 : f32 to vector<64x128xf32>
    %c0_2 = arith.constant 0 : index
    %c0_3 = arith.constant 0 : index
    %3 = vector.load %arg8[%c0_2, %c0_3] : memref<64x128xf32, #tpu.memory_space<vmem>>, vector<64x128xf32>
    tpu.vector_store %arg8[%c0_2, %c0_3], %2 {strides = array<i32>} : memref<64x128xf32, #tpu.memory_space<vmem>>, vector<64x128xf32>,
    %c0_i32 = arith.constant 0 : i32
    %c128_i32 = arith.constant 128 : i32
    %4 = arith.muli %c0_i32, %c128_i32 : i32
    %5 = tpu.assume_multiple %4, 128 : i32
    %c0_4 = arith.constant 0 : index
    %c0_5 = arith.constant 0 : index
    %6 = arith.index_cast %5 : i32 to index
    %7 = vector.load %arg1[%c0_4, %c0_5, %6] : memref<1x64x256xf32, #tpu.memory_space<vmem>>, vector<1x64x128xf32>
    %8 = vector.shape_cast %7 : vector<1x64x128xf32> to vector<64x128xf32>
    %c0_6 = arith.constant 0 : index
    %c0_7 = arith.constant 0 : index
    %9 = vector.load %arg7[%c0_6, %c0_7] : memref<64x128xf32, #tpu.memory_space<vmem>>, vector<64x128xf32>
    %10 = arith.addf %9, %8 : vector<64x128xf32>
    %c0_8 = arith.constant 0 : index
    %c0_9 = arith.constant 0 : index
    %11 = vector.load %arg7[%c0_8, %c0_9] : memref<64x128xf32, #tpu.memory_space<vmem>>, vector<64x128xf32>
    tpu.vector_store %arg7[%c0_8, %c0_9], %10 {strides = array<i32>} : memref<64x128xf32, #tpu.memory_space<vmem>>, vector<64x128xf32>,
    %c0_10 = arith.constant 0 : index
    %c0_11 = arith.constant 0 : index
    %12 = vector.load %arg8[%c0_10, %c0_11] : memref<64x128xf32, #tpu.memory_space<vmem>>, vector<64x128xf32>
    %13 = arith.maximumf %12, %8 : vector<64x128xf32>
    %c0_12 = arith.constant 0 : index
    %c0_13 = arith.constant 0 : index
    %14 = vector.load %arg8[%c0_12, %c0_13] : memref<64x128xf32, #tpu.memory_space<vmem>>, vector<64x128xf32>
    tpu.vector_store %arg8[%c0_12, %c0_13], %13 {strides = array<i32>} : memref<64x128xf32, #tpu.memory_space<vmem>>, vector<64x128xf32>,
    %c1_i32 = arith.constant 1 : i32
    %c128_i32_14 = arith.constant 128 : i32
    %15 = arith.muli %c1_i32, %c128_i32_14 : i32
    %16 = tpu.assume_multiple %15, 128 : i32
    %c0_15 = arith.constant 0 : index
    %c0_16 = arith.constant 0 : index
    %17 = arith.index_cast %16 : i32 to index
    %18 = vector.load %arg1[%c0_15, %c0_16, %17] : memref<1x64x256xf32, #tpu.memory_space<vmem>>, vector<1x64x128xf32>
    %19 = vector.shape_cast %18 : vector<1x64x128xf32> to vector<64x128xf32>
    %c0_17 = arith.constant 0 : index
    %c0_18 = arith.constant 0 : index
    %20 = vector.load %arg7[%c0_17, %c0_18] : memref<64x128xf32, #tpu.memory_space<vmem>>, vector<64x128xf32>
    %21 = arith.addf %20, %19 : vector<64x128xf32>
    %c0_19 = arith.constant 0 : index
    %c0_20 = arith.constant 0 : index
    %22 = vector.load %arg7[%c0_19, %c0_20] : memref<64x128xf32, #tpu.memory_space<vmem>>, vector<64x128xf32>
    tpu.vector_store %arg7[%c0_19, %c0_20], %21 {strides = array<i32>} : memref<64x128xf32, #tpu.memory_space<vmem>>, vector<64x128xf32>,
    %c0_21 = arith.constant 0 : index
    %c0_22 = arith.constant 0 : index
    %23 = vector.load %arg8[%c0_21, %c0_22] : memref<64x128xf32, #tpu.memory_space<vmem>>, vector<64x128xf32>
    %24 = arith.maximumf %23, %19 : vector<64x128xf32>
    %c0_23 = arith.constant 0 : index
    %c0_24 = arith.constant 0 : index
    %25 = vector.load %arg8[%c0_23, %c0_24] : memref<64x128xf32, #tpu.memory_space<vmem>>, vector<64x128xf32>
    tpu.vector_store %arg8[%c0_23, %c0_24], %24 {strides = array<i32>} : memref<64x128xf32, #tpu.memory_space<vmem>>, vector<64x128xf32>,
    %c2_i32 = arith.constant 2 : i32
    %c0_25 = arith.constant 0 : index
    %c0_26 = arith.constant 0 : index
    %26 = vector.load %arg7[%c0_25, %c0_26] : memref<64x128xf32, #tpu.memory_space<vmem>>, vector<64x128xf32>
    %cst_27 = arith.constant dense<0.000000e+00> : vector<64xf32>
    %27 = vector.multi_reduction <add>, %26, %cst_27 [1] : vector<64x128xf32> to vector<64xf32>
    %28 = vector.shape_cast %27 : vector<64xf32> to vector<64x1xf32>
    %cst_28 = arith.constant 3.906250e-03 : f32
    %29 = vector.broadcast %cst_28 : f32 to vector<64x1xf32>
    %30 = arith.mulf %28, %29 : vector<64x1xf32>
    %c0_29 = arith.constant 0 : index
    %c0_30 = arith.constant 0 : index
    %31 = vector.load %arg8[%c0_29, %c0_30] : memref<64x128xf32, #tpu.memory_space<vmem>>, vector<64x128xf32>
    %cst_31 = arith.constant dense<0xFF800000> : vector<64xf32>
    %32 = vector.multi_reduction <maximumf>, %31, %cst_31 [1] : vector<64x128xf32> to vector<64xf32>
    %33 = vector.shape_cast %32 : vector<64xf32> to vector<64x1xf32>
    %c0_32 = arith.constant 0 : index
    %c0_33 = arith.constant 0 : index
    %34 = vector.load %arg2[%c0_32, %c0_33] : memref<8x64xf32, #tpu.memory_space<vmem>>, vector<8x64xf32>
    %cst_34 = arith.constant dense<0.000000e+00> : vector<8x1xf32>
    %35 = tpu.matmul %34, %30, %cst_34 {dimension_numbers = #tpu.dot_dimension_numbers<[1], [0], [0], [1], [0, 0, 1, 1], [], []>} : vector<8x64xf32>, vector<64x1xf32>, vector<8x1xf32> -> vector<8x1xf32>
    %c0_35 = arith.constant 0 : index
    %c0_36 = arith.constant 0 : index
    %36 = vector.load %arg3[%c0_35, %c0_36] : memref<8x1xf32, #tpu.memory_space<vmem>>, vector<8x1xf32>
    %37 = arith.addf %35, %36 : vector<8x1xf32>
    %cst_37 = arith.constant 0.000000e+00 : f32
    %38 = vector.broadcast %cst_37 : f32 to vector<8x1xf32>
    %39 = arith.maximumf %37, %38 : vector<8x1xf32>
    %c0_38 = arith.constant 0 : index
    %c0_39 = arith.constant 0 : index
    %40 = vector.load %arg2[%c0_38, %c0_39] : memref<8x64xf32, #tpu.memory_space<vmem>>, vector<8x64xf32>
    %cst_40 = arith.constant dense<0.000000e+00> : vector<8x1xf32>
    %41 = tpu.matmul %40, %33, %cst_40 {dimension_numbers = #tpu.dot_dimension_numbers<[1], [0], [0], [1], [0, 0, 1, 1], [], []>} : vector<8x64xf32>, vector<64x1xf32>, vector<8x1xf32> -> vector<8x1xf32>
    %c0_41 = arith.constant 0 : index
    %c0_42 = arith.constant 0 : index
    %42 = vector.load %arg3[%c0_41, %c0_42] : memref<8x1xf32, #tpu.memory_space<vmem>>, vector<8x1xf32>
    %43 = arith.addf %41, %42 : vector<8x1xf32>
    %cst_43 = arith.constant 0.000000e+00 : f32
    %44 = vector.broadcast %cst_43 : f32 to vector<8x1xf32>
    %45 = arith.maximumf %43, %44 : vector<8x1xf32>
    %c0_44 = arith.constant 0 : index
    %c0_45 = arith.constant 0 : index
    %46 = vector.load %arg4[%c0_44, %c0_45] : memref<64x8xf32, #tpu.memory_space<vmem>>, vector<64x8xf32>
    %cst_46 = arith.constant dense<0.000000e+00> : vector<64x1xf32>
    %47 = tpu.matmul %46, %39, %cst_46 {dimension_numbers = #tpu.dot_dimension_numbers<[1], [0], [0], [1], [0, 0, 1, 1], [], []>} : vector<64x8xf32>, vector<8x1xf32>, vector<64x1xf32> -> vector<64x1xf32>
    %c0_47 = arith.constant 0 : index
    %c0_48 = arith.constant 0 : index
    %48 = vector.load %arg5[%c0_47, %c0_48] : memref<64x1xf32, #tpu.memory_space<vmem>>, vector<64x1xf32>
    %49 = arith.addf %47, %48 : vector<64x1xf32>
    %c0_49 = arith.constant 0 : index
    %c0_50 = arith.constant 0 : index
    %50 = vector.load %arg4[%c0_49, %c0_50] : memref<64x8xf32, #tpu.memory_space<vmem>>, vector<64x8xf32>
    %cst_51 = arith.constant dense<0.000000e+00> : vector<64x1xf32>
    %51 = tpu.matmul %50, %45, %cst_51 {dimension_numbers = #tpu.dot_dimension_numbers<[1], [0], [0], [1], [0, 0, 1, 1], [], []>} : vector<64x8xf32>, vector<8x1xf32>, vector<64x1xf32> -> vector<64x1xf32>
    %c0_52 = arith.constant 0 : index
    %c0_53 = arith.constant 0 : index
    %52 = vector.load %arg5[%c0_52, %c0_53] : memref<64x1xf32, #tpu.memory_space<vmem>>, vector<64x1xf32>
    %53 = arith.addf %51, %52 : vector<64x1xf32>
    %54 = arith.addf %49, %53 : vector<64x1xf32>
    %55 = arith.negf %54 : vector<64x1xf32>
    %56 = math.exp %55 : vector<64x1xf32>
    %cst_54 = arith.constant 1.000000e+00 : f32
    %57 = vector.broadcast %cst_54 : f32 to vector<64x1xf32>
    %58 = arith.addf %57, %56 : vector<64x1xf32>
    %59 = arith.divf %57, %58 : vector<64x1xf32>
    %c0_55 = arith.constant 0 : index
    %c0_56 = arith.constant 0 : index
    %c0_57 = arith.constant 0 : index
    %60 = vector.load %arg1[%c0_55, %c0_56, %c0_57] : memref<1x64x256xf32, #tpu.memory_space<vmem>>, vector<1x64x256xf32>
    %61 = vector.shape_cast %59 : vector<64x1xf32> to vector<1x64x1xf32>
    %62 = vector.broadcast %61 : vector<1x64x1xf32> to vector<1x64x256xf32>
    %63 = arith.mulf %60, %62 : vector<1x64x256xf32>
    %c0_58 = arith.constant 0 : index
    %c0_59 = arith.constant 0 : index
    %c0_60 = arith.constant 0 : index
    %64 = vector.load %arg6[%c0_58, %c0_59, %c0_60] : memref<1x64x256xf32, #tpu.memory_space<vmem>>, vector<1x64x256xf32>
    tpu.vector_store %arg6[%c0_58, %c0_59, %c0_60], %63 {strides = array<i32>} : memref<1x64x256xf32, #tpu.memory_space<vmem>>, vector<1x64x256xf32>,
    return
  }
  func.func @transform_0(%arg0: i32) -> (i32, i32, i32) {
    %c0_i32 = arith.constant 0 : i32
    %c0_i32_0 = arith.constant 0 : i32
    %c0_i32_1 = arith.constant 0 : i32
    return %arg0, %c0_i32, %c0_i32_0 : i32, i32, i32
  }
  func.func @transform_1(%arg0: i32) -> (i32, i32) {
    %c0_i32 = arith.constant 0 : i32
    %c0_i32_0 = arith.constant 0 : i32
    %c0_i32_1 = arith.constant 0 : i32
    return %c0_i32, %c0_i32_0 : i32, i32
  }
  func.func @transform_2(%arg0: i32) -> (i32, i32) {
    %c0_i32 = arith.constant 0 : i32
    %c0_i32_0 = arith.constant 0 : i32
    %c0_i32_1 = arith.constant 0 : i32
    return %c0_i32, %c0_i32_0 : i32, i32
  }
  func.func @transform_3(%arg0: i32) -> (i32, i32) {
    %c0_i32 = arith.constant 0 : i32
    %c0_i32_0 = arith.constant 0 : i32
    %c0_i32_1 = arith.constant 0 : i32
    return %c0_i32, %c0_i32_0 : i32, i32
  }
  func.func @transform_4(%arg0: i32) -> (i32, i32) {
    %c0_i32 = arith.constant 0 : i32
    %c0_i32_0 = arith.constant 0 : i32
    %c0_i32_1 = arith.constant 0 : i32
    return %c0_i32, %c0_i32_0 : i32, i32
  }
  func.func @transform_5(%arg0: i32) -> (i32, i32, i32) {
    %c0_i32 = arith.constant 0 : i32
    %c0_i32_0 = arith.constant 0 : i32
    %c0_i32_1 = arith.constant 0 : i32
    return %arg0, %c0_i32, %c0_i32_0 : i32, i32, i32
  }
}

</mosaic_0001>

<llo_original>
// kernel: tpu_custom_call.1
$region0: #{tpu_custom_call.1}
  #allocation0 [shape = 'u32[]', space=smem, size = 0x4, offset = 0x4, fixed_abs, tag = 'smem constant byte address 0x4 - core index']
  #allocation1 [shape = 'u32[72,128]{1,0:T(1,128)}', space=vmem, size = 0x9000, scoped, tag = 'internal scratch']
  #allocation2 [shape = 'f32[64,128]{1,0:T(8,128)}', space=vmem, size = 0x8000, scoped, tag = 'scratch operand']
  #allocation3 [shape = 'f32[64,128]{1,0:T(8,128)}', space=vmem, size = 0x8000, scoped, tag = 'scratch operand']
  %s0 = inlined_call_operand.hbm [shape: f32[2,64,256], index: 0, kind: input, shape index: {}]
  %s1 = inlined_call_operand.vmem [shape: f32[8,64], index: 1, kind: input, shape index: {}]
  %s2 = inlined_call_operand.vmem [shape: f32[8,1], index: 2, kind: input, shape index: {}]
  %s3 = inlined_call_operand.vmem [shape: f32[64,8], index: 3, kind: input, shape index: {}]
  %s4 = inlined_call_operand.vmem [shape: f32[64,1], index: 4, kind: input, shape index: {}]
  %s5 = inlined_call_operand.hbm [shape: f32[2,64,256], index: 5, kind: output, shape index: {}]
  %s6 = sld [smem:[#allocation0]]
  $region57: #{tpu_custom_call.1} parent=0
    _
  %s8 = ssub.s32 1, %s6
  %s9 = scalar_select 0, %s8, %s6
  $region1: #{tpu_custom_call.1} parent=0
    #allocation4 [shape = 'u8[131072]{0}', space=vmem, size = 0x20000, scoped, tag = 'input window, operand 0']
    #allocation5 [shape = 's32[2]{0}', space=sflag, size = 0x8, scoped, tag = 'scoped memory for tpu_custom_call.1']
    #allocation6 [shape = 's32[2]{0}', space=sflag, size = 0x8, scoped, tag = 'scoped memory for tpu_custom_call.1']
    #allocation7 [shape = 'u8[131072]{0}', space=vmem, size = 0x20000, scoped, tag = 'output window, operand 0']
    %10 = vsyncpa [#allocation5], 0
    %s11 = scalar_lea.sflag [#allocation5], 1
    %12 = vsyncpa %s11, 0
    %13 = vsyncpa [#allocation6], 0
    %s14 = scalar_lea.sflag [#allocation6], 1
    %15 = vsyncpa %s14, 0
    loop: start=0, step=1, limit=4
    $region2: #{tpu_custom_call.1} parent=1 // loop_pre_header
      _
    $region3: #{tpu_custom_call.1} parent=1 // loop_header
      %s17 = sphi 0, %s21
      %p18 = scmp.ge.s32.totalorder %s17, 4
      %s27 = sphi 0, %s29
      %s30 = sphi 0, %s27
      %s31 = sphi 0, %s30
      %s47 = sphi 0, %s31
      %s51 = sphi 0, %s51
      %s53 = sphi 0, %s51
      %s54 = sphi 0, %s53
      %s68 = sphi 0, %s54
      %s72 = sphi 0, %s72
      %s74 = sphi 0, %s72
      %s75 = sphi 0, %s74
      %s89 = sphi 0, %s75
      %s93 = sphi 0, %s93
      %s95 = sphi 0, %s93
      %s96 = sphi 0, %s95
      %s110 = sphi 0, %s96
      %s114 = sphi 0, %s114
      %s116 = sphi 0, %s114
      %s117 = sphi 0, %s116
      %s131 = sphi 0, %s117
      %s137 = sphi 0, %s139
      %s140 = sphi 0, %s137
      %s141 = sphi 0, %s140
      %s157 = sphi 0, %s141
    $region4: #{tpu_custom_call.1} parent=1 // loop_header_branch
      %20 = sbr.rel (%p18) target = $region8
    $region5: #{tpu_custom_call.1} parent=1 // loop_body
      %s22 = ssub.s32 %s17, 1
      %s23 = ssub.s32 %s17, 2
      %s24 = sadd.s32 %s17, 1
      %s25 = ssub.s32 %s17, %s24
      %p26 = scmp.eq.s32.totalorder %s25, 0
      %s28 = sadd.s32 %s27, 1
      %s29 = scalar_select %p26, %s27, %s28
      %p32 = pneg %p26
      %p33 = scmp.eq.s32.totalorder %s17, 1
      %p34 = por %p32, %p33
      %p35 = scmp.ne.s32.totalorder %s27, %s30
      %p36 = scmp.eq.s32.totalorder %s17, 0
      %p37 = por %p35, %p36
      %p38 = scmp.ne.s32.totalorder %s27, %s30
      %p39 = scmp.eq.s32.totalorder %s22, 1
      %p40 = por %p38, %p39
      %p41 = scmp.ne.s32.totalorder %s30, %s31
      %p42 = scmp.eq.s32.totalorder %s22, 0
      %p43 = por %p41, %p42
      %p44 = scmp.ne.s32.totalorder %s30, %s31
      %p45 = scmp.eq.s32.totalorder %s23, 1
      %p46 = por %p44, %p45
      %p48 = scmp.ne.s32.totalorder %s31, %s47
      %p49 = scmp.eq.s32.totalorder %s23, 0
      %p50 = por %p48, %p49
      %s52 = sadd.s32 %s51, 1
      %p55 = scmp.eq.s32.totalorder %s17, 1
      %p56 = scmp.ne.s32.totalorder %s51, %s53
      %p57 = scmp.eq.s32.totalorder %s17, 0
      %p58 = por %p56, %p57
      %p59 = scmp.ne.s32.totalorder %s51, %s53
      %p60 = scmp.eq.s32.totalorder %s22, 1
      %p61 = por %p59, %p60
      %p62 = scmp.ne.s32.totalorder %s53, %s54
      %p63 = scmp.eq.s32.totalorder %s22, 0
      %p64 = por %p62, %p63
      %p65 = scmp.ne.s32.totalorder %s53, %s54
      %p66 = scmp.eq.s32.totalorder %s23, 1
      %p67 = por %p65, %p66
      %p69 = scmp.ne.s32.totalorder %s54, %s68
      %p70 = scmp.eq.s32.totalorder %s23, 0
      %p71 = por %p69, %p70
      %s73 = sadd.s32 %s72, 1
      %p76 = scmp.eq.s32.totalorder %s17, 1
      %p77 = scmp.ne.s32.totalorder %s72, %s74
      %p78 = scmp.eq.s32.totalorder %s17, 0
      %p79 = por %p77, %p78
      %p80 = scmp.ne.s32.totalorder %s72, %s74
      %p81 = scmp.eq.s32.totalorder %s22, 1
      %p82 = por %p80, %p81
      %p83 = scmp.ne.s32.totalorder %s74, %s75
      %p84 = scmp.eq.s32.totalorder %s22, 0
      %p85 = por %p83, %p84
      %p86 = scmp.ne.s32.totalorder %s74, %s75
      %p87 = scmp.eq.s32.totalorder %s23, 1
      %p88 = por %p86, %p87
      %p90 = scmp.ne.s32.totalorder %s75, %s89
      %p91 = scmp.eq.s32.totalorder %s23, 0
      %p92 = por %p90, %p91
      %s94 = sadd.s32 %s93, 1
      %p97 = scmp.eq.s32.totalorder %s17, 1
      %p98 = scmp.ne.s32.totalorder %s93, %s95
      %p99 = scmp.eq.s32.totalorder %s17, 0
      %p100 = por %p98, %p99
      %p101 = scmp.ne.s32.totalorder %s93, %s95
      %p102 = scmp.eq.s32.totalorder %s22, 1
      %p103 = por %p101, %p102
      %p104 = scmp.ne.s32.totalorder %s95, %s96
      %p105 = scmp.eq.s32.totalorder %s22, 0
      %p106 = por %p104, %p105
      %p107 = scmp.ne.s32.totalorder %s95, %s96
      %p108 = scmp.eq.s32.totalorder %s23, 1
      %p109 = por %p107, %p108
      %p111 = scmp.ne.s32.totalorder %s96, %s110
      %p112 = scmp.eq.s32.totalorder %s23, 0
      %p113 = por %p111, %p112
      %s115 = sadd.s32 %s114, 1
      %p118 = scmp.eq.s32.totalorder %s17, 1
      %p119 = scmp.ne.s32.totalorder %s114, %s116
      %p120 = scmp.eq.s32.totalorder %s17, 0
      %p121 = por %p119, %p120
      %p122 = scmp.ne.s32.totalorder %s114, %s116
      %p123 = scmp.eq.s32.totalorder %s22, 1
      %p124 = por %p122, %p123
      %p125 = scmp.ne.s32.totalorder %s116, %s117
      %p126 = scmp.eq.s32.totalorder %s22, 0
      %p127 = por %p125, %p126
      %p128 = scmp.ne.s32.totalorder %s116, %s117
      %p129 = scmp.eq.s32.totalorder %s23, 1
      %p130 = por %p128, %p129
      %p132 = scmp.ne.s32.totalorder %s117, %s131
      %p133 = scmp.eq.s32.totalorder %s23, 0
      %p134 = por %p132, %p133
      %s135 = ssub.s32 %s17, %s24
      %p136 = scmp.eq.s32.totalorder %s135, 0
      %s138 = sadd.s32 %s137, 1
      %s139 = scalar_select %p136, %s137, %s138
      %p142 = pneg %p136
      %p143 = scmp.eq.s32.totalorder %s17, 1
      %p144 = por %p142, %p143
      %p145 = scmp.ne.s32.totalorder %s137, %s140
      %p146 = scmp.eq.s32.totalorder %s17, 0
      %p147 = por %p145, %p146
      %p148 = scmp.ne.s32.totalorder %s137, %s140
      %p149 = scmp.eq.s32.totalorder %s22, 1
      %p150 = por %p148, %p149
      %p151 = scmp.ne.s32.totalorder %s140, %s141
      %p152 = scmp.eq.s32.totalorder %s22, 0
      %p153 = por %p151, %p152
      %p154 = scmp.ne.s32.totalorder %s140, %s141
      %p155 = scmp.eq.s32.totalorder %s23, 1
      %p156 = por %p154, %p155
      %p158 = scmp.ne.s32.totalorder %s141, %s157
      %p159 = scmp.eq.s32.totalorder %s23, 0
      %p160 = por %p158, %p159
      %p161 = scmp.le.s32.totalorder 1, %s17
      %p162 = scmp.lt.s32.totalorder %s17, 3
      %p163 = pnand %p161, %p162
      %p164 = pneg %p163
      // Predicated region
      $region9: #{tpu_custom_call.1} parent=5 // pred_check
        _
      $region10: #{tpu_custom_call.1} parent=5 // pred_check_branch
        %166 = sbr.rel (%p163) target = $region12
      $region11: #{tpu_custom_call.1} parent=5 // pred_region
        %s167 = ssub.s32 %s17, 1
        // Predicated region
        $region13: #{tpu_custom_call.1} parent=11 // pred_check
          %p168 = pneg %p64
        $region14: #{tpu_custom_call.1} parent=11 // pred_check_branch
          %170 = sbr.rel (%p168) target = $region16
        $region15: #{tpu_custom_call.1} parent=11 // pred_region
          _
        $region16: #{tpu_custom_call.1} parent=11 // pred_fallthru
          _
        // Predicated region
        $region17: #{tpu_custom_call.1} parent=11 // pred_check
          %p171 = pneg %p85
        $region18: #{tpu_custom_call.1} parent=11 // pred_check_branch
          %173 = sbr.rel (%p171) target = $region20
        $region19: #{tpu_custom_call.1} parent=11 // pred_region
          _
        $region20: #{tpu_custom_call.1} parent=11 // pred_fallthru
          _
        // Predicated region
        $region21: #{tpu_custom_call.1} parent=11 // pred_check
          %p174 = pneg %p106
        $region22: #{tpu_custom_call.1} parent=11 // pred_check_branch
          %176 = sbr.rel (%p174) target = $region24
        $region23: #{tpu_custom_call.1} parent=11 // pred_region
          _
        $region24: #{tpu_custom_call.1} parent=11 // pred_fallthru
          _
        // Predicated region
        $region25: #{tpu_custom_call.1} parent=11 // pred_check
          %p177 = pneg %p127
        $region26: #{tpu_custom_call.1} parent=11 // pred_check_branch
          %179 = sbr.rel (%p177) target = $region28
        $region27: #{tpu_custom_call.1} parent=11 // pred_region
          _
        $region28: #{tpu_custom_call.1} parent=11 // pred_fallthru
          _
      $region12: #{tpu_custom_call.1} parent=5 // pred_fallthru
        _
      %p180 = scmp.lt.s32.totalorder %s17, 2
      // Predicated region
      $region29: #{tpu_custom_call.1} parent=5 // pred_check
        %p181 = pneg %p180
      $region30: #{tpu_custom_call.1} parent=5 // pred_check_branch
        %183 = sbr.rel (%p181) target = $region32
      $region31: #{tpu_custom_call.1} parent=5 // pred_region
        // Predicated region
        $region33: #{tpu_custom_call.1} parent=31 // pred_check
          %p184 = pneg %p37
        $region34: #{tpu_custom_call.1} parent=31 // pred_check_branch
          %186 = sbr.rel (%p184) target = $region36
        $region35: #{tpu_custom_call.1} parent=31 // pred_region
          %s187 = sand.u32 %s27, 1
          %s188 = scalar_lea.sflag [#allocation5], %s187
          %s189 = sand.u32 %s27, 1
          %s190 = smul.addr %s189, 128
          %s191 = scalar_lea.vmem [#allocation4], %s190
          %193 = vsyncadd %s188, 0
          %s194 = smul.addr %s17, 16
          %s195 = smul.addr %s194, 8
          %s196 = scalar_lea.hbm %s0, %s195
          %s197 = sshll.u32 %s196, 4
          %s198 = int_to_ptr.hbm [resolvable:$true] %s197
          %s199 = sshll.u32 %s191, 4
          %s200 = int_to_ptr.vmem [resolvable:$true] %s199
          %205 = dma.hbm_to_vmem [thread:$0]  %s198, 2048, %s200, %s188, 256, 256, 16
        $region36: #{tpu_custom_call.1} parent=31 // pred_fallthru
          _
      $region32: #{tpu_custom_call.1} parent=5 // pred_fallthru
        _
      %p206 = scmp.le.s32.totalorder 1, %s17
      %p207 = scmp.lt.s32.totalorder %s17, 3
      %p208 = pnand %p206, %p207
      %p209 = pneg %p208
      // Predicated region
      $region37: #{tpu_custom_call.1} parent=5 // pred_check
        _
      $region38: #{tpu_custom_call.1} parent=5 // pred_check_branch
        %211 = sbr.rel (%p208) target = $region40
      $region39: #{tpu_custom_call.1} parent=5 // pred_region
        %s212 = ssub.s32 %s17, 1
        %s213 = sand.u32 %s30, 1
        %s214 = scalar_lea.sflag [#allocation5], %s213
        %s215 = sand.u32 %s30, 1
        %s216 = smul.addr %s215, 128
        %s217 = scalar_lea.vmem [#allocation4], %s216
        // Predicated region
        $region41: #{tpu_custom_call.1} parent=39 // pred_check
          %p218 = pneg %p43
        $region42: #{tpu_custom_call.1} parent=39 // pred_check_branch
          %220 = sbr.rel (%p218) target = $region44
        $region43: #{tpu_custom_call.1} parent=39 // pred_region
          %222 = dma.done %s214, 2048
        $region44: #{tpu_custom_call.1} parent=39 // pred_fallthru
          _
        %s223 = sand.u32 %s30, 1
        %s224 = scalar_lea.sflag [#allocation5], %s223
        %s225 = sand.u32 %s30, 1
        %s226 = smul.addr %s225, 128
        %s227 = scalar_lea.vmem [#allocation4], %s226
        %p228 = pneg %p43
        %p229 = pneg %p40
        %p230 = pneg %p64
        %p231 = pneg %p61
        %p232 = pneg %p85
        %p233 = pneg %p82
        %p234 = pneg %p106
        %p235 = pneg %p103
        %p236 = pneg %p127
        %p237 = pneg %p124
        %p238 = pneg %p153
        %p239 = pneg %p150
        %s240 = sand.u32 %s140, 1
        %s241 = scalar_lea.sflag [#allocation6], %s240
        %s242 = sand.u32 %s140, 1
        %s243 = smul.addr %s242, 128
        %s244 = scalar_lea.vmem [#allocation7], %s243
        %245 = vst [vmem:[#allocation2] sm:$0xff] 0.0
        %246 = vst [vmem:[#allocation2 + $0x8] sm:$0xff] 0.0
        %247 = vst [vmem:[#allocation2 + $0x10] sm:$0xff] 0.0
        %248 = vst [vmem:[#allocation2 + $0x18] sm:$0xff] 0.0
        %249 = vst [vmem:[#allocation2 + $0x20] sm:$0xff] 0.0
        %250 = vst [vmem:[#allocation2 + $0x28] sm:$0xff] 0.0
        %251 = vst [vmem:[#allocation2 + $0x30] sm:$0xff] 0.0
        %252 = vst [vmem:[#allocation2 + $0x38] sm:$0xff] 0.0
        %253 = vst [vmem:[#allocation3] sm:$0xff] -inf
        %254 = vst [vmem:[#allocation3 + $0x8] sm:$0xff] -inf
        %255 = vst [vmem:[#allocation3 + $0x10] sm:$0xff] -inf
        %256 = vst [vmem:[#allocation3 + $0x18] sm:$0xff] -inf
        %257 = vst [vmem:[#allocation3 + $0x20] sm:$0xff] -inf
        %258 = vst [vmem:[#allocation3 + $0x28] sm:$0xff] -inf
        %259 = vst [vmem:[#allocation3 + $0x30] sm:$0xff] -inf
        %260 = vst [vmem:[#allocation3 + $0x38] sm:$0xff] -inf
        %v261 = vld [vmem:[%s217] sm:$0xff]
        %v262 = vld [vmem:[%s217 + $0x10] sm:$0xff]
        %v263 = vld [vmem:[%s217 + $0x20] sm:$0xff]
        %v264 = vld [vmem:[%s217 + $0x30] sm:$0xff]
        %v265 = vld [vmem:[%s217 + $0x40] sm:$0xff]
        %v266 = vld [vmem:[%s217 + $0x50] sm:$0xff]
        %v267 = vld [vmem:[%s217 + $0x60] sm:$0xff]
        %v268 = vld [vmem:[%s217 + $0x70] sm:$0xff]
        %v269 = vld [vmem:[#allocation2] sm:$0xff]
        %v270 = vld [vmem:[#allocation2 + $0x8] sm:$0xff]
        %v271 = vld [vmem:[#allocation2 + $0x10] sm:$0xff]
        %v272 = vld [vmem:[#allocation2 + $0x18] sm:$0xff]
        %v273 = vld [vmem:[#allocation2 + $0x20] sm:$0xff]
        %v274 = vld [vmem:[#allocation2 + $0x28] sm:$0xff]
        %v275 = vld [vmem:[#allocation2 + $0x30] sm:$0xff]
        %v276 = vld [vmem:[#allocation2 + $0x38] sm:$0xff]
        %v277 = vadd.f32 %v269, %v261
        %v278 = vadd.f32 %v270, %v262
        %v279 = vadd.f32 %v271, %v263
        %v280 = vadd.f32 %v272, %v264
        %v281 = vadd.f32 %v273, %v265
        %v282 = vadd.f32 %v274, %v266
        %v283 = vadd.f32 %v275, %v267
        %v284 = vadd.f32 %v276, %v268
        %285 = vst [vmem:[#allocation2] sm:$0xff] %v277
        %286 = vst [vmem:[#allocation2 + $0x8] sm:$0xff] %v278
        %287 = vst [vmem:[#allocation2 + $0x10] sm:$0xff] %v279
        %288 = vst [vmem:[#allocation2 + $0x18] sm:$0xff] %v280
        %289 = vst [vmem:[#allocation2 + $0x20] sm:$0xff] %v281
        %290 = vst [vmem:[#allocation2 + $0x28] sm:$0xff] %v282
        %291 = vst [vmem:[#allocation2 + $0x30] sm:$0xff] %v283
        %292 = vst [vmem:[#allocation2 + $0x38] sm:$0xff] %v284
        %v293 = vld [vmem:[#allocation3] sm:$0xff]
        %v294 = vld [vmem:[#allocation3 + $0x8] sm:$0xff]
        %v295 = vld [vmem:[#allocation3 + $0x10] sm:$0xff]
        %v296 = vld [vmem:[#allocation3 + $0x18] sm:$0xff]
        %v297 = vld [vmem:[#allocation3 + $0x20] sm:$0xff]
        %v298 = vld [vmem:[#allocation3 + $0x28] sm:$0xff]
        %v299 = vld [vmem:[#allocation3 + $0x30] sm:$0xff]
        %v300 = vld [vmem:[#allocation3 + $0x38] sm:$0xff]
        %v301 = vmax.f32 %v293, %v261
        %v302 = vmax.f32 %v294, %v262
        %v303 = vmax.f32 %v295, %v263
        %v304 = vmax.f32 %v296, %v264
        %v305 = vmax.f32 %v297, %v265
        %v306 = vmax.f32 %v298, %v266
        %v307 = vmax.f32 %v299, %v267
        %v308 = vmax.f32 %v300, %v268
        %309 = vst [vmem:[#allocation3] sm:$0xff] %v301
        %310 = vst [vmem:[#allocation3 + $0x8] sm:$0xff] %v302
        %311 = vst [vmem:[#allocation3 + $0x10] sm:$0xff] %v303
        %312 = vst [vmem:[#allocation3 + $0x18] sm:$0xff] %v304
        %313 = vst [vmem:[#allocation3 + $0x20] sm:$0xff] %v305
        %314 = vst [vmem:[#allocation3 + $0x28] sm:$0xff] %v306
        %315 = vst [vmem:[#allocation3 + $0x30] sm:$0xff] %v307
        %316 = vst [vmem:[#allocation3 + $0x38] sm:$0xff] %v308
        %s317 = scalar_lea.vmem %s217, 8 [#allocation4]
        %v318 = vld [vmem:[%s317] sm:$0xff]
        %v319 = vld [vmem:[%s317 + $0x10] sm:$0xff]
        %v320 = vld [vmem:[%s317 + $0x20] sm:$0xff]
        %v321 = vld [vmem:[%s317 + $0x30] sm:$0xff]
        %v322 = vld [vmem:[%s317 + $0x40] sm:$0xff]
        %v323 = vld [vmem:[%s317 + $0x50] sm:$0xff]
        %v324 = vld [vmem:[%s317 + $0x60] sm:$0xff]
        %v325 = vld [vmem:[%s317 + $0x70] sm:$0xff]
        %v326 = vld [vmem:[#allocation2] sm:$0xff]
        %v327 = vld [vmem:[#allocation2 + $0x8] sm:$0xff]
        %v328 = vld [vmem:[#allocation2 + $0x10] sm:$0xff]
        %v329 = vld [vmem:[#allocation2 + $0x18] sm:$0xff]
        %v330 = vld [vmem:[#allocation2 + $0x20] sm:$0xff]
        %v331 = vld [vmem:[#allocation2 + $0x28] sm:$0xff]
        %v332 = vld [vmem:[#allocation2 + $0x30] sm:$0xff]
        %v333 = vld [vmem:[#allocation2 + $0x38] sm:$0xff]
        %v334 = vadd.f32 %v326, %v318
        %v335 = vadd.f32 %v327, %v319
        %v336 = vadd.f32 %v328, %v320
        %v337 = vadd.f32 %v329, %v321
        %v338 = vadd.f32 %v330, %v322
        %v339 = vadd.f32 %v331, %v323
        %v340 = vadd.f32 %v332, %v324
        %v341 = vadd.f32 %v333, %v325
        %342 = vst [vmem:[#allocation2] sm:$0xff] %v334
        %343 = vst [vmem:[#allocation2 + $0x8] sm:$0xff] %v335
        %344 = vst [vmem:[#allocation2 + $0x10] sm:$0xff] %v336
        %345 = vst [vmem:[#allocation2 + $0x18] sm:$0xff] %v337
        %346 = vst [vmem:[#allocation2 + $0x20] sm:$0xff] %v338
        %347 = vst [vmem:[#allocation2 + $0x28] sm:$0xff] %v339
        %348 = vst [vmem:[#allocation2 + $0x30] sm:$0xff] %v340
        %349 = vst [vmem:[#allocation2 + $0x38] sm:$0xff] %v341
        %v350 = vld [vmem:[#allocation3] sm:$0xff]
        %v351 = vld [vmem:[#allocation3 + $0x8] sm:$0xff]
        %v352 = vld [vmem:[#allocation3 + $0x10] sm:$0xff]
        %v353 = vld [vmem:[#allocation3 + $0x18] sm:$0xff]
        %v354 = vld [vmem:[#allocation3 + $0x20] sm:$0xff]
        %v355 = vld [vmem:[#allocation3 + $0x28] sm:$0xff]
        %v356 = vld [vmem:[#allocation3 + $0x30] sm:$0xff]
        %v357 = vld [vmem:[#allocation3 + $0x38] sm:$0xff]
        %v358 = vmax.f32 %v350, %v318
        %v359 = vmax.f32 %v351, %v319
        %v360 = vmax.f32 %v352, %v320
        %v361 = vmax.f32 %v353, %v321
        %v362 = vmax.f32 %v354, %v322
        %v363 = vmax.f32 %v355, %v323
        %v364 = vmax.f32 %v356, %v324
        %v365 = vmax.f32 %v357, %v325
        %366 = vst [vmem:[#allocation3] sm:$0xff] %v358
        %367 = vst [vmem:[#allocation3 + $0x8] sm:$0xff] %v359
        %368 = vst [vmem:[#allocation3 + $0x10] sm:$0xff] %v360
        %369 = vst [vmem:[#allocation3 + $0x18] sm:$0xff] %v361
        %370 = vst [vmem:[#allocation3 + $0x20] sm:$0xff] %v362
        %371 = vst [vmem:[#allocation3 + $0x28] sm:$0xff] %v363
        %372 = vst [vmem:[#allocation3 + $0x30] sm:$0xff] %v364
        %373 = vst [vmem:[#allocation3 + $0x38] sm:$0xff] %v365
        %v374 = vld [vmem:[#allocation2] sm:$0xff]
        %v375 = vld [vmem:[#allocation2 + $0x8] sm:$0xff]
        %v376 = vld [vmem:[#allocation2 + $0x10] sm:$0xff]
        %v377 = vld [vmem:[#allocation2 + $0x18] sm:$0xff]
        %v378 = vld [vmem:[#allocation2 + $0x20] sm:$0xff]
        %v379 = vld [vmem:[#allocation2 + $0x28] sm:$0xff]
        %v380 = vld [vmem:[#allocation2 + $0x30] sm:$0xff]
        %v381 = vld [vmem:[#allocation2 + $0x38] sm:$0xff]
        %382 = vadd.xlane.f32.xlu0 %v374
        %v383 = vpop.xlane.xlu0 %382
        %384 = vadd.xlane.f32.xlu0 %v375
        %v385 = vpop.xlane.xlu0 %384
        %386 = vadd.xlane.f32.xlu0 %v376
        %v387 = vpop.xlane.xlu0 %386
        %388 = vadd.xlane.f32.xlu0 %v377
        %v389 = vpop.xlane.xlu0 %388
        %390 = vadd.xlane.f32.xlu0 %v378
        %v391 = vpop.xlane.xlu0 %390
        %392 = vadd.xlane.f32.xlu0 %v379
        %v393 = vpop.xlane.xlu0 %392
        %394 = vadd.xlane.f32.xlu0 %v380
        %v395 = vpop.xlane.xlu0 %394
        %396 = vadd.xlane.f32.xlu0 %v381
        %v397 = vpop.xlane.xlu0 %396
        %v398 = vmul.f32 %v383, 0.00390625
        %v399 = vmul.f32 %v385, 0.00390625
        %v400 = vmul.f32 %v387, 0.00390625
        %v401 = vmul.f32 %v389, 0.00390625
        %v402 = vmul.f32 %v391, 0.00390625
        %v403 = vmul.f32 %v393, 0.00390625
        %v404 = vmul.f32 %v395, 0.00390625
        %v405 = vmul.f32 %v397, 0.00390625
        %v406 = vld [vmem:[#allocation3] sm:$0xff]
        %v407 = vld [vmem:[#allocation3 + $0x8] sm:$0xff]
        %v408 = vld [vmem:[#allocation3 + $0x10] sm:$0xff]
        %v409 = vld [vmem:[#allocation3 + $0x18] sm:$0xff]
        %v410 = vld [vmem:[#allocation3 + $0x20] sm:$0xff]
        %v411 = vld [vmem:[#allocation3 + $0x28] sm:$0xff]
        %v412 = vld [vmem:[#allocation3 + $0x30] sm:$0xff]
        %v413 = vld [vmem:[#allocation3 + $0x38] sm:$0xff]
        %414 = vmax.xlane.f32.xlu0 %v406
        %v415 = vpop.xlane.xlu0 %414
        %416 = vmax.xlane.f32.xlu0 %v407
        %v417 = vpop.xlane.xlu0 %416
        %418 = vmax.xlane.f32.xlu0 %v408
        %v419 = vpop.xlane.xlu0 %418
        %420 = vmax.xlane.f32.xlu0 %v409
        %v421 = vpop.xlane.xlu0 %420
        %422 = vmax.xlane.f32.xlu0 %v410
        %v423 = vpop.xlane.xlu0 %422
        %424 = vmax.xlane.f32.xlu0 %v411
        %v425 = vpop.xlane.xlu0 %424
        %426 = vmax.xlane.f32.xlu0 %v412
        %v427 = vpop.xlane.xlu0 %426
        %428 = vmax.xlane.f32.xlu0 %v413
        %v429 = vpop.xlane.xlu0 %428
        %v430 = vld [vmem:[%s1] sm:$0xff]
        %v431 = vld [vmem:[%s2] sm:$0xff]
        %vm432 = vcmask 523264
        %v434 = vsel %vm432, %v430, 0
        %436 = vmatpush.msra.mxu0 0.0
        %437 = vmatpush.msra.mxu0 0.0
        %438 = vmatpush.msra.mxu0 0.0
        %439 = vmatpush.msra.mxu0 0.0
        %440 = vmatpush.msra.mxu0 0.0
        %441 = vmatpush.msra.mxu0 0.0
        %442 = vmatpush.msra.mxu0 0.0
        %443 = vmatpush.msra.mxu0 0.0
        %444 = vmatpush.msra.mxu0 %v405
        %445 = vmatpush.msra.mxu0 %v404
        %446 = vmatpush.msra.mxu0 %v403
        %447 = vmatpush.msra.mxu0 %v402
        %448 = vmatpush.msra.mxu0 %v401
        %449 = vmatpush.msra.mxu0 %v400
        %450 = vmatpush.msra.mxu0 %v399
        %451 = vmatpush.msra.mxu0 %v398
        %452 = vmatmul.f32.gmra.mxu0 %v434
        %v453 = vpop.f32.mrf.mxu0
        %v454 = vadd.f32 %v431, %v453
        %455 = vdwg.mxu0
        %v456 = vmax.f32 %v454, 0.0
        %457 = vmatpush.msra.mxu0 0.0
        %458 = vmatpush.msra.mxu0 0.0
        %459 = vmatpush.msra.mxu0 0.0
        %460 = vmatpush.msra.mxu0 0.0
        %461 = vmatpush.msra.mxu0 0.0
        %462 = vmatpush.msra.mxu0 0.0
        %463 = vmatpush.msra.mxu0 0.0
        %464 = vmatpush.msra.mxu0 0.0
        %465 = vmatpush.msra.mxu0 %v429
        %466 = vmatpush.msra.mxu0 %v427
        %467 = vmatpush.msra.mxu0 %v425
        %468 = vmatpush.msra.mxu0 %v423
        %469 = vmatpush.msra.mxu0 %v421
        %470 = vmatpush.msra.mxu0 %v419
        %471 = vmatpush.msra.mxu0 %v417
        %472 = vmatpush.msra.mxu0 %v415
        %473 = vmatmul.f32.gmra.mxu0 %v434
        %v474 = vpop.f32.mrf.mxu0
        %v475 = vadd.f32 %v431, %v474
        %476 = vdwg.mxu0
        %v477 = vmax.f32 %v475, 0.0
        %v478 = vld [vmem:[%s3] sm:$0xff]
        %v479 = vld [vmem:[%s3 + $0x8] sm:$0xff]
        %v480 = vld [vmem:[%s3 + $0x10] sm:$0xff]
        %v481 = vld [vmem:[%s3 + $0x18] sm:$0xff]
        %v482 = vld [vmem:[%s3 + $0x20] sm:$0xff]
        %v483 = vld [vmem:[%s3 + $0x28] sm:$0xff]
        %v484 = vld [vmem:[%s3 + $0x30] sm:$0xff]
        %v485 = vld [vmem:[%s3 + $0x38] sm:$0xff]
        %v486 = vld [vmem:[%s4] sm:$0xff]
        %v487 = vld [vmem:[%s4 + $0x8] sm:$0xff]
        %v488 = vld [vmem:[%s4 + $0x10] sm:$0xff]
        %v489 = vld [vmem:[%s4 + $0x18] sm:$0xff]
        %v490 = vld [vmem:[%s4 + $0x20] sm:$0xff]
        %v491 = vld [vmem:[%s4 + $0x28] sm:$0xff]
        %v492 = vld [vmem:[%s4 + $0x30] sm:$0xff]
        %v493 = vld [vmem:[%s4 + $0x38] sm:$0xff]
        %vm494 = vcmask 64512
        %v496 = vsel %vm494, %v478, 0
        %v499 = vsel %vm494, %v479, 0
        %v502 = vsel %vm494, %v480, 0
        %v505 = vsel %vm494, %v481, 0
        %v508 = vsel %vm494, %v482, 0
        %v511 = vsel %vm494, %v483, 0
        %v514 = vsel %vm494, %v484, 0
        %v517 = vsel %vm494, %v485, 0
        %519 = vmatpush.msra.mxu0 0.0
        %520 = vmatpush.msra.mxu0 0.0
        %521 = vmatpush.msra.mxu0 0.0
        %522 = vmatpush.msra.mxu0 0.0
        %523 = vmatpush.msra.mxu0 0.0
        %524 = vmatpush.msra.mxu0 0.0
        %525 = vmatpush.msra.mxu0 0.0
        %526 = vmatpush.msra.mxu0 0.0
        %527 = vmatpush.msra.mxu0 0.0
        %528 = vmatpush.msra.mxu0 0.0
        %529 = vmatpush.msra.mxu0 0.0
        %530 = vmatpush.msra.mxu0 0.0
        %531 = vmatpush.msra.mxu0 0.0
        %532 = vmatpush.msra.mxu0 0.0
        %533 = vmatpush.msra.mxu0 0.0
        %534 = vmatpush.msra.mxu0 %v456
        %535 = vmatmul.f32.gmra.mxu0 %v496
        %v536 = vpop.f32.mrf.mxu0
        %v537 = vadd.f32 %v486, %v536
        %538 = vmatmul.f32.gmra.mxu0 %v499
        %v539 = vpop.f32.mrf.mxu0
        %v540 = vadd.f32 %v487, %v539
        %541 = vmatmul.f32.gmra.mxu0 %v502
        %v542 = vpop.f32.mrf.mxu0
        %v543 = vadd.f32 %v488, %v542
        %544 = vmatmul.f32.gmra.mxu0 %v505
        %v545 = vpop.f32.mrf.mxu0
        %v546 = vadd.f32 %v489, %v545
        %547 = vmatmul.f32.gmra.mxu0 %v508
        %v548 = vpop.f32.mrf.mxu0
        %v549 = vadd.f32 %v490, %v548
        %550 = vmatmul.f32.gmra.mxu0 %v511
        %v551 = vpop.f32.mrf.mxu0
        %v552 = vadd.f32 %v491, %v551
        %553 = vmatmul.f32.gmra.mxu0 %v514
        %v554 = vpop.f32.mrf.mxu0
        %v555 = vadd.f32 %v492, %v554
        %556 = vmatmul.f32.gmra.mxu0 %v517
        %v557 = vpop.f32.mrf.mxu0
        %v558 = vadd.f32 %v493, %v557
        %559 = vdwg.mxu0
        %560 = vmatpush.msra.mxu0 0.0
        %561 = vmatpush.msra.mxu0 0.0
        %562 = vmatpush.msra.mxu0 0.0
        %563 = vmatpush.msra.mxu0 0.0
        %564 = vmatpush.msra.mxu0 0.0
        %565 = vmatpush.msra.mxu0 0.0
        %566 = vmatpush.msra.mxu0 0.0
        %567 = vmatpush.msra.mxu0 0.0
        %568 = vmatpush.msra.mxu0 0.0
        %569 = vmatpush.msra.mxu0 0.0
        %570 = vmatpush.msra.mxu0 0.0
        %571 = vmatpush.msra.mxu0 0.0
        %572 = vmatpush.msra.mxu0 0.0
        %573 = vmatpush.msra.mxu0 0.0
        %574 = vmatpush.msra.mxu0 0.0
        %575 = vmatpush.msra.mxu0 %v477
        %576 = vmatmul.f32.gmra.mxu0 %v496
        %v577 = vpop.f32.mrf.mxu0
        %v578 = vadd.f32 %v486, %v577
        %579 = vmatmul.f32.gmra.mxu0 %v499
        %v580 = vpop.f32.mrf.mxu0
        %v581 = vadd.f32 %v487, %v580
        %582 = vmatmul.f32.gmra.mxu0 %v502
        %v583 = vpop.f32.mrf.mxu0
        %v584 = vadd.f32 %v488, %v583
        %585 = vmatmul.f32.gmra.mxu0 %v505
        %v586 = vpop.f32.mrf.mxu0
        %v587 = vadd.f32 %v489, %v586
        %588 = vmatmul.f32.gmra.mxu0 %v508
        %v589 = vpop.f32.mrf.mxu0
        %v590 = vadd.f32 %v490, %v589
        %591 = vmatmul.f32.gmra.mxu0 %v511
        %v592 = vpop.f32.mrf.mxu0
        %v593 = vadd.f32 %v491, %v592
        %594 = vmatmul.f32.gmra.mxu0 %v514
        %v595 = vpop.f32.mrf.mxu0
        %v596 = vadd.f32 %v492, %v595
        %597 = vmatmul.f32.gmra.mxu0 %v517
        %v598 = vpop.f32.mrf.mxu0
        %v599 = vadd.f32 %v493, %v598
        %600 = vdwg.mxu0
        %v601 = vadd.f32 %v537, %v578
        %v602 = vadd.f32 %v540, %v581
        %v603 = vadd.f32 %v543, %v584
        %v604 = vadd.f32 %v546, %v587
        %v605 = vadd.f32 %v549, %v590
        %v606 = vadd.f32 %v552, %v593
        %v607 = vadd.f32 %v555, %v596
        %v608 = vadd.f32 %v558, %v599
        %v609 = vxor.u32 %v601, 2147483648
        %v610 = vxor.u32 %v602, 2147483648
        %v611 = vxor.u32 %v603, 2147483648
        %v612 = vxor.u32 %v604, 2147483648
        %v613 = vxor.u32 %v605, 2147483648
        %v614 = vxor.u32 %v606, 2147483648
        %v615 = vxor.u32 %v607, 2147483648
        %v616 = vxor.u32 %v608, 2147483648
        %v617 = vmul.f32 %v609, 1.442695
        %v618 = vpow.pop %v617
        %v619 = vmul.f32 %v610, 1.442695
        %v620 = vpow.pop %v619
        %v621 = vmul.f32 %v611, 1.442695
        %v622 = vpow.pop %v621
        %v623 = vmul.f32 %v612, 1.442695
        %v624 = vpow.pop %v623
        %v625 = vmul.f32 %v613, 1.442695
        %v626 = vpow.pop %v625
        %v627 = vmul.f32 %v614, 1.442695
        %v628 = vpow.pop %v627
        %v629 = vmul.f32 %v615, 1.442695
        %v630 = vpow.pop %v629
        %v631 = vmul.f32 %v616, 1.442695
        %v632 = vpow.pop %v631
        %v633 = vadd.f32 %v618, 1.0
        %v634 = vadd.f32 %v620, 1.0
        %v635 = vadd.f32 %v622, 1.0
        %v636 = vadd.f32 %v624, 1.0
        %v637 = vadd.f32 %v626, 1.0
        %v638 = vadd.f32 %v628, 1.0
        %v639 = vadd.f32 %v630, 1.0
        %v640 = vadd.f32 %v632, 1.0
        %v641 = vrcp.pop %v633
        %v642 = vmul.f32 %v633, %v641
        %v643 = vsub.f32 1.0, %v642
        %v644 = vmul.f32 %v641, %v643
        %v645 = vadd.f32 %v641, %v644
        %vm646 = vweird.f32 %v633
        %vm647 = vweird.f32 %v641
        %vm648 = vmor %vm646, %vm647
        %v649 = vsel %vm648, %v641, %v645
        %v650 = vand.u32 2147483647, %v633
        %vm651 = vcmp.eq.f32.partialorder %v650, 8.507059e+37
        %v652 = vand.u32 %v633, 2147483648
        %v653 = vor.u32 1.1754944e-38, %v652
        %v654 = vsel %vm651, %v653, %v649
        %v655 = vmul.f32 1.0, %v654
        %v656 = vrcp.pop %v634
        %v657 = vmul.f32 %v634, %v656
        %v658 = vsub.f32 1.0, %v657
        %v659 = vmul.f32 %v656, %v658
        %v660 = vadd.f32 %v656, %v659
        %vm661 = vweird.f32 %v634
        %vm662 = vweird.f32 %v656
        %vm663 = vmor %vm661, %vm662
        %v664 = vsel %vm663, %v656, %v660
        %v665 = vand.u32 2147483647, %v634
        %vm666 = vcmp.eq.f32.partialorder %v665, 8.507059e+37
        %v667 = vand.u32 %v634, 2147483648
        %v668 = vor.u32 1.1754944e-38, %v667
        %v669 = vsel %vm666, %v668, %v664
        %v670 = vmul.f32 1.0, %v669
        %v671 = vrcp.pop %v635
        %v672 = vmul.f32 %v635, %v671
        %v673 = vsub.f32 1.0, %v672
        %v674 = vmul.f32 %v671, %v673
        %v675 = vadd.f32 %v671, %v674
        %vm676 = vweird.f32 %v635
        %vm677 = vweird.f32 %v671
        %vm678 = vmor %vm676, %vm677
        %v679 = vsel %vm678, %v671, %v675
        %v680 = vand.u32 2147483647, %v635
        %vm681 = vcmp.eq.f32.partialorder %v680, 8.507059e+37
        %v682 = vand.u32 %v635, 2147483648
        %v683 = vor.u32 1.1754944e-38, %v682
        %v684 = vsel %vm681, %v683, %v679
        %v685 = vmul.f32 1.0, %v684
        %v686 = vrcp.pop %v636
        %v687 = vmul.f32 %v636, %v686
        %v688 = vsub.f32 1.0, %v687
        %v689 = vmul.f32 %v686, %v688
        %v690 = vadd.f32 %v686, %v689
        %vm691 = vweird.f32 %v636
        %vm692 = vweird.f32 %v686
        %vm693 = vmor %vm691, %vm692
        %v694 = vsel %vm693, %v686, %v690
        %v695 = vand.u32 2147483647, %v636
        %vm696 = vcmp.eq.f32.partialorder %v695, 8.507059e+37
        %v697 = vand.u32 %v636, 2147483648
        %v698 = vor.u32 1.1754944e-38, %v697
        %v699 = vsel %vm696, %v698, %v694
        %v700 = vmul.f32 1.0, %v699
        %v701 = vrcp.pop %v637
        %v702 = vmul.f32 %v637, %v701
        %v703 = vsub.f32 1.0, %v702
        %v704 = vmul.f32 %v701, %v703
        %v705 = vadd.f32 %v701, %v704
        %vm706 = vweird.f32 %v637
        %vm707 = vweird.f32 %v701
        %vm708 = vmor %vm706, %vm707
        %v709 = vsel %vm708, %v701, %v705
        %v710 = vand.u32 2147483647, %v637
        %vm711 = vcmp.eq.f32.partialorder %v710, 8.507059e+37
        %v712 = vand.u32 %v637, 2147483648
        %v713 = vor.u32 1.1754944e-38, %v712
        %v714 = vsel %vm711, %v713, %v709
        %v715 = vmul.f32 1.0, %v714
        %v716 = vrcp.pop %v638
        %v717 = vmul.f32 %v638, %v716
        %v718 = vsub.f32 1.0, %v717
        %v719 = vmul.f32 %v716, %v718
        %v720 = vadd.f32 %v716, %v719
        %vm721 = vweird.f32 %v638
        %vm722 = vweird.f32 %v716
        %vm723 = vmor %vm721, %vm722
        %v724 = vsel %vm723, %v716, %v720
        %v725 = vand.u32 2147483647, %v638
        %vm726 = vcmp.eq.f32.partialorder %v725, 8.507059e+37
        %v727 = vand.u32 %v638, 2147483648
        %v728 = vor.u32 1.1754944e-38, %v727
        %v729 = vsel %vm726, %v728, %v724
        %v730 = vmul.f32 1.0, %v729
        %v731 = vrcp.pop %v639
        %v732 = vmul.f32 %v639, %v731
        %v733 = vsub.f32 1.0, %v732
        %v734 = vmul.f32 %v731, %v733
        %v735 = vadd.f32 %v731, %v734
        %vm736 = vweird.f32 %v639
        %vm737 = vweird.f32 %v731
        %vm738 = vmor %vm736, %vm737
        %v739 = vsel %vm738, %v731, %v735
        %v740 = vand.u32 2147483647, %v639
        %vm741 = vcmp.eq.f32.partialorder %v740, 8.507059e+37
        %v742 = vand.u32 %v639, 2147483648
        %v743 = vor.u32 1.1754944e-38, %v742
        %v744 = vsel %vm741, %v743, %v739
        %v745 = vmul.f32 1.0, %v744
        %v746 = vrcp.pop %v640
        %v747 = vmul.f32 %v640, %v746
        %v748 = vsub.f32 1.0, %v747
        %v749 = vmul.f32 %v746, %v748
        %v750 = vadd.f32 %v746, %v749
        %vm751 = vweird.f32 %v640
        %vm752 = vweird.f32 %v746
        %vm753 = vmor %vm751, %vm752
        %v754 = vsel %vm753, %v746, %v750
        %v755 = vand.u32 2147483647, %v640
        %vm756 = vcmp.eq.f32.partialorder %v755, 8.507059e+37
        %v757 = vand.u32 %v640, 2147483648
        %v758 = vor.u32 1.1754944e-38, %v757
        %v759 = vsel %vm756, %v758, %v754
        %v760 = vmul.f32 1.0, %v759
        %v761 = vld [vmem:[%s217] sm:$0xff]
        %v762 = vld [vmem:[%s217 + $0x8] sm:$0xff]
        %v763 = vld [vmem:[%s217 + $0x10] sm:$0xff]
        %v764 = vld [vmem:[%s217 + $0x18] sm:$0xff]
        %v765 = vld [vmem:[%s217 + $0x20] sm:$0xff]
        %v766 = vld [vmem:[%s217 + $0x28] sm:$0xff]
        %v767 = vld [vmem:[%s217 + $0x30] sm:$0xff]
        %v768 = vld [vmem:[%s217 + $0x38] sm:$0xff]
        %v769 = vld [vmem:[%s217 + $0x40] sm:$0xff]
        %v770 = vld [vmem:[%s217 + $0x48] sm:$0xff]
        %v771 = vld [vmem:[%s217 + $0x50] sm:$0xff]
        %v772 = vld [vmem:[%s217 + $0x58] sm:$0xff]
        %v773 = vld [vmem:[%s217 + $0x60] sm:$0xff]
        %v774 = vld [vmem:[%s217 + $0x68] sm:$0xff]
        %v775 = vld [vmem:[%s217 + $0x70] sm:$0xff]
        %v776 = vld [vmem:[%s217 + $0x78] sm:$0xff]
        %778 = vset.pattern.permute.xlu0 0
        %779 = vperm.xlu0 %778, %v655
        %v780 = vpop.permute.xlu0 %779
        %783 = vset.pattern.permute.xlu0 0
        %784 = vperm.xlu0 %783, %v670
        %v785 = vpop.permute.xlu0 %784
        %788 = vset.pattern.permute.xlu0 0
        %789 = vperm.xlu0 %788, %v685
        %v790 = vpop.permute.xlu0 %789
        %793 = vset.pattern.permute.xlu0 0
        %794 = vperm.xlu0 %793, %v700
        %v795 = vpop.permute.xlu0 %794
        %798 = vset.pattern.permute.xlu0 0
        %799 = vperm.xlu0 %798, %v715
        %v800 = vpop.permute.xlu0 %799
        %803 = vset.pattern.permute.xlu0 0
        %804 = vperm.xlu0 %803, %v730
        %v805 = vpop.permute.xlu0 %804
        %808 = vset.pattern.permute.xlu0 0
        %809 = vperm.xlu0 %808, %v745
        %v810 = vpop.permute.xlu0 %809
        %813 = vset.pattern.permute.xlu0 0
        %814 = vperm.xlu0 %813, %v760
        %v815 = vpop.permute.xlu0 %814
        %v817 = vmul.f32 %v761, %v780
        %v818 = vmul.f32 %v762, %v780
        %v819 = vmul.f32 %v763, %v785
        %v820 = vmul.f32 %v764, %v785
        %v821 = vmul.f32 %v765, %v790
        %v822 = vmul.f32 %v766, %v790
        %v823 = vmul.f32 %v767, %v795
        %v824 = vmul.f32 %v768, %v795
        %v825 = vmul.f32 %v769, %v800
        %v826 = vmul.f32 %v770, %v800
        %v827 = vmul.f32 %v771, %v805
        %v828 = vmul.f32 %v772, %v805
        %v829 = vmul.f32 %v773, %v810
        %v830 = vmul.f32 %v774, %v810
        %v831 = vmul.f32 %v775, %v815
        %v832 = vmul.f32 %v776, %v815
        %833 = vst [vmem:[%s244] sm:$0xff] %v817
        %834 = vst [vmem:[%s244 + $0x8] sm:$0xff] %v818
        %835 = vst [vmem:[%s244 + $0x10] sm:$0xff] %v819
        %836 = vst [vmem:[%s244 + $0x18] sm:$0xff] %v820
        %837 = vst [vmem:[%s244 + $0x20] sm:$0xff] %v821
        %838 = vst [vmem:[%s244 + $0x28] sm:$0xff] %v822
        %839 = vst [vmem:[%s244 + $0x30] sm:$0xff] %v823
        %840 = vst [vmem:[%s244 + $0x38] sm:$0xff] %v824
        %841 = vst [vmem:[%s244 + $0x40] sm:$0xff] %v825
        %842 = vst [vmem:[%s244 + $0x48] sm:$0xff] %v826
        %843 = vst [vmem:[%s244 + $0x50] sm:$0xff] %v827
        %844 = vst [vmem:[%s244 + $0x58] sm:$0xff] %v828
        %845 = vst [vmem:[%s244 + $0x60] sm:$0xff] %v829
        %846 = vst [vmem:[%s244 + $0x68] sm:$0xff] %v830
        %847 = vst [vmem:[%s244 + $0x70] sm:$0xff] %v831
        %848 = vst [vmem:[%s244 + $0x78] sm:$0xff] %v832
        %s849 = sand.u32 %s140, 1
        %s850 = scalar_lea.sflag [#allocation6], %s849
        %s851 = sand.u32 %s140, 1
        %s852 = smul.addr %s851, 128
        %s853 = scalar_lea.vmem [#allocation7], %s852
        // Predicated region
        $region45: #{tpu_custom_call.1} parent=39 // pred_check
          %p854 = pneg %p150
        $region46: #{tpu_custom_call.1} parent=39 // pred_check_branch
          %856 = sbr.rel (%p854) target = $region48
        $region47: #{tpu_custom_call.1} parent=39 // pred_region
          %858 = vsyncadd %s850, 0
          %s859 = smul.addr %s22, 16
          %s860 = smul.addr %s859, 8
          %s861 = scalar_lea.hbm %s5, %s860
          %s862 = sshll.u32 %s853, 4
          %s863 = int_to_ptr.vmem [resolvable:$true] %s862
          %s864 = sshll.u32 %s861, 4
          %s865 = int_to_ptr.hbm [resolvable:$true] %s864
          %870 = dma.vmem_to_hbm [thread:$0]  %s863, 2048, %s865, %s850, 256, 256, 16
        $region48: #{tpu_custom_call.1} parent=39 // pred_fallthru
          _
      $region40: #{tpu_custom_call.1} parent=5 // pred_fallthru
        _
      %p871 = scmp.le.s32.totalorder 2, %s17
      // Predicated region
      $region49: #{tpu_custom_call.1} parent=5 // pred_check
        %p872 = pneg %p871
      $region50: #{tpu_custom_call.1} parent=5 // pred_check_branch
        %874 = sbr.rel (%p872) target = $region52
      $region51: #{tpu_custom_call.1} parent=5 // pred_region
        %s875 = ssub.s32 %s17, 2
        // Predicated region
        $region53: #{tpu_custom_call.1} parent=51 // pred_check
          %p876 = pneg %p156
        $region54: #{tpu_custom_call.1} parent=51 // pred_check_branch
          %878 = sbr.rel (%p876) target = $region56
        $region55: #{tpu_custom_call.1} parent=51 // pred_region
          %s879 = sand.u32 %s141, 1
          %s880 = scalar_lea.sflag [#allocation6], %s879
          %s881 = sand.u32 %s141, 1
          %s882 = smul.addr %s881, 128
          %s883 = scalar_lea.vmem [#allocation7], %s882
          %885 = dma.done %s880, 2048
        $region56: #{tpu_custom_call.1} parent=51 // pred_fallthru
          _
      $region52: #{tpu_custom_call.1} parent=5 // pred_fallthru
        _
    $region6: #{tpu_custom_call.1} parent=1 // loop_footer
      %s21 = sadd.s32 1, %s17
    $region7: #{tpu_custom_call.1} parent=1 // loop_footer_branch
      %16 = sbr.rel target = $region3
    $region8: #{tpu_custom_call.1} parent=1 // loop_exit
      _
    %886 = vsyncpa [#allocation5], 1
    %s887 = scalar_lea.sflag [#allocation5], 1
    %888 = vsyncpa %s887, 1
    %889 = vsyncpa [#allocation6], 1
    %s890 = scalar_lea.sflag [#allocation6], 1
    %891 = vsyncpa %s890, 1

</llo_original>
